<compile_context>
chip_gen: v5e
topology: v5e:2x2
jax: 0.10.0
libtpu: 0.0.40
codegen_flags: <defaults>
</compile_context>

<pallas_src>
import jax
import jax.numpy as jnp
from jax.experimental import pallas as pl
from jax.experimental.pallas import tpu as pltpu


def rotationnet_kernel(x_ref, wfc_ref, bf_ref, pool_ref, wcls_ref, bcls_ref,
                       out_ref):
    # x_ref    : [C, B*HW]   all batch elements side by side on the lane axis
    # wfc_ref  : [F, C]      1x1-conv weight (pre-transposed once at prep time)
    # bf_ref   : [F, 1]      conv bias (column -> lane broadcast)
    # pool_ref : [B*HW, B]   block-diagonal average-pool matrix (entries 1/HW)
    # wcls_ref : [F, 4]      classifier weight (original layout)
    # bcls_ref : [1, 4]      classifier bias (row)
    # out_ref  : [B, 4]      logits, written once, no wrapper-side transpose

    # 1x1 conv over the whole batch: one MXU push, N = B*HW lanes (lane-dense).
    feat = jnp.dot(wfc_ref[...], x_ref[...],
                   preferred_element_type=jnp.float32)          # [F, B*HW]
    feat = jnp.maximum(feat + bf_ref[...], 0.0)                 # bias + ReLU

    # Global average pool for every batch element in one MXU push.
    pooled = jnp.dot(feat, pool_ref[...],
                     preferred_element_type=jnp.float32)        # [F, B]

    # Classifier, emitted directly in [B, 4] layout (tiny in-kernel transpose).
    logits = jnp.dot(pooled.T, wcls_ref[...],
                     preferred_element_type=jnp.float32) + bcls_ref[...]  # [B, 4]
    out_ref[...] = logits.astype(out_ref.dtype)


def prepare_params(wconv, bconv, wcls, bcls):
    """One-time parameter prep (hoisted out of the per-call forward)."""
    feat_size = wconv.shape[1]
    return (jnp.transpose(wconv),            # [F, C]
            bconv.reshape(feat_size, 1),     # [F, 1]
            wcls,                            # [F, 4]
            bcls.reshape(1, 4))              # [1, 4]


def make_pool_matrix(batch, hw):
    """Block-diagonal [B*HW, B] matrix with entries 1/HW: feat @ P averages the
    HW lanes belonging to each batch element. Built once per (B, HW)."""
    eye = jnp.eye(batch, dtype=jnp.float32)
    return jnp.repeat(eye, hw, axis=0) * (1.0 / float(hw))


def rotationnet_forward(x_nchw, params, pool_mat):
    """x_nchw: [B, C, H, W] f32; params from prepare_params; pool_mat from
    make_pool_matrix(B, H*W).  Returns logits [B, 4]."""
    wfc, bf, wcls, bcls = params
    B, C, H, W = x_nchw.shape
    HW = H * W
    F = wfc.shape[0]

    # Single tiny relayout: NCHW -> [C, B*HW]  (column q = b*HW + p).
    x2d = jnp.transpose(x_nchw.reshape(B, C, HW), (1, 0, 2)).reshape(C, B * HW)

    return pl.pallas_call(
        rotationnet_kernel,
        out_shape=jax.ShapeDtypeStruct((B, 4), jnp.float32),
        grid_spec=pltpu.PrefetchScalarGridSpec(
            num_scalar_prefetch=0,
            grid=(1,),
            in_specs=[
                pl.BlockSpec((C, B * HW), lambda i: (0, 0)),
                pl.BlockSpec((F, C), lambda i: (0, 0)),
                pl.BlockSpec((F, 1), lambda i: (0, 0)),
                pl.BlockSpec((B * HW, B), lambda i: (0, 0)),
                pl.BlockSpec((F, 4), lambda i: (0, 0)),
                pl.BlockSpec((1, 4), lambda i: (0, 0)),
            ],
            out_specs=pl.BlockSpec((B, 4), lambda i: (0, 0)),
        ),
        compiler_params=pltpu.CompilerParams(
            dimension_semantics=("arbitrary",)),
    )(x2d, wfc, bf, pool_mat, wcls, bcls)


if __name__ == "__main__":
    # Small shapes consistent with the module's forward.
    B, C, H, W = 2, 4, 16, 16
    FEATURE_SIZE = 32          # feature_extractor.feature_size

    key = jax.random.PRNGKey(0)
    kx, kw1, kb1, kw2, kb2 = jax.random.split(key, 5)

    x = jax.random.normal(kx, (B, C, H, W), dtype=jnp.float32)

    # Deterministic parameter init (synthetic; not a checkpoint load).
    wconv = jax.random.normal(kw1, (C, FEATURE_SIZE), dtype=jnp.float32) * 0.1
    bconv = jax.random.normal(kb1, (FEATURE_SIZE,), dtype=jnp.float32) * 0.01
    wcls = jax.random.normal(kw2, (FEATURE_SIZE, 4), dtype=jnp.float32) * 0.1
    bcls = jax.random.normal(kb2, (4,), dtype=jnp.float32) * 0.01

    # One-time prep (hoisted out of the forward path).
    params = prepare_params(wconv, bconv, wcls, bcls)
    pool_mat = make_pool_matrix(B, H * W)

    logits = rotationnet_forward(x, params, pool_mat)
    jax.block_until_ready(logits)

    # Pure-JAX reference check (matches the PyTorch forward semantics).
    x_bpc = jnp.transpose(x, (0, 2, 3, 1)).reshape(B, H * W, C)
    feat = jnp.maximum(jnp.einsum('bpc,cf->bpf', x_bpc, wconv) + bconv, 0.0)
    ref = jnp.mean(feat, axis=1) @ wcls + bcls

    assert logits.shape == (B, 4)
    assert jnp.allclose(logits, ref, atol=1e-4, rtol=1e-4), (
        float(jnp.max(jnp.abs(logits - ref))))

    # TODO(synk): training-side pieces (Adam, CrossEntropyLoss, _data_augmentation)
    # are host/optimizer logic, not part of the forward pass, and are not kernels.
    print("KERNEL_OK")
</pallas_src>

<mosaic_0001>
module attributes {stable_mosaic.version = 11 : i64} {
  func.func @rotationnet_kernel(%arg0: i32, %arg1: memref<4x512xf32, #tpu.memory_space<vmem>>, %arg2: memref<32x4xf32, #tpu.memory_space<vmem>>, %arg3: memref<32x1xf32, #tpu.memory_space<vmem>>, %arg4: memref<512x2xf32, #tpu.memory_space<vmem>>, %arg5: memref<32x4xf32, #tpu.memory_space<vmem>>, %arg6: memref<1x4xf32, #tpu.memory_space<vmem>>, %arg7: memref<2x4xf32, #tpu.memory_space<vmem>>) attributes {dimension_semantics = [#tpu.dimension_semantics<arbitrary>], iteration_bounds = array<i64: 1>, scalar_prefetch = 0 : i64, scratch_operands = 0 : i64, tpu.core_type = #tpu.core_type<tc>, window_params = [{pipeline_mode = #tpu.pipeline_mode<synchronous>, transform_indices = @transform_0, window_bounds = array<i64: 4, 512>}, {pipeline_mode = #tpu.pipeline_mode<synchronous>, transform_indices = @transform_1, window_bounds = array<i64: 32, 4>}, {pipeline_mode = #tpu.pipeline_mode<synchronous>, transform_indices = @transform_2, window_bounds = array<i64: 32, 1>}, {pipeline_mode = #tpu.pipeline_mode<synchronous>, transform_indices = @transform_3, window_bounds = array<i64: 512, 2>}, {pipeline_mode = #tpu.pipeline_mode<synchronous>, transform_indices = @transform_4, window_bounds = array<i64: 32, 4>}, {pipeline_mode = #tpu.pipeline_mode<synchronous>, transform_indices = @transform_5, window_bounds = array<i64: 1, 4>}, {pipeline_mode = #tpu.pipeline_mode<synchronous>, transform_indices = @transform_6, window_bounds = array<i64: 2, 4>}]} {
    %c0 = arith.constant 0 : index
    %c0_0 = arith.constant 0 : index
    %0 = vector.load %arg2[%c0, %c0_0] : memref<32x4xf32, #tpu.memory_space<vmem>>, vector<32x4xf32>
    %c0_1 = arith.constant 0 : index
    %c0_2 = arith.constant 0 : index
    %1 = vector.load %arg1[%c0_1, %c0_2] : memref<4x512xf32, #tpu.memory_space<vmem>>, vector<4x512xf32>
    %cst = arith.constant dense<0.000000e+00> : vector<32x512xf32>
    %2 = tpu.matmul %0, %1, %cst {dimension_numbers = #tpu.dot_dimension_numbers<[1], [0], [0], [1], [0, 0, 1, 1], [], []>} : vector<32x4xf32>, vector<4x512xf32>, vector<32x512xf32> -> vector<32x512xf32>
    %c0_3 = arith.constant 0 : index
    %c0_4 = arith.constant 0 : index
    %3 = vector.load %arg3[%c0_3, %c0_4] : memref<32x1xf32, #tpu.memory_space<vmem>>, vector<32x1xf32>
    %4 = vector.broadcast %3 : vector<32x1xf32> to vector<32x512xf32>
    %5 = arith.addf %2, %4 : vector<32x512xf32>
    %cst_5 = arith.constant 0.000000e+00 : f32
    %6 = vector.broadcast %cst_5 : f32 to vector<32x512xf32>
    %7 = arith.maximumf %5, %6 : vector<32x512xf32>
    %c0_6 = arith.constant 0 : index
    %c0_7 = arith.constant 0 : index
    %8 = vector.load %arg4[%c0_6, %c0_7] : memref<512x2xf32, #tpu.memory_space<vmem>>, vector<512x2xf32>
    %cst_8 = arith.constant dense<0.000000e+00> : vector<32x2xf32>
    %9 = tpu.matmul %7, %8, %cst_8 {dimension_numbers = #tpu.dot_dimension_numbers<[1], [0], [0], [1], [0, 0, 1, 1], [], []>} : vector<32x512xf32>, vector<512x2xf32>, vector<32x2xf32> -> vector<32x2xf32>
    %10 = tpu.transpose %9, [1, 0] : vector<32x2xf32> -> vector<2x32xf32>
    %c0_9 = arith.constant 0 : index
    %c0_10 = arith.constant 0 : index
    %11 = vector.load %arg5[%c0_9, %c0_10] : memref<32x4xf32, #tpu.memory_space<vmem>>, vector<32x4xf32>
    %cst_11 = arith.constant dense<0.000000e+00> : vector<2x4xf32>
    %12 = tpu.matmul %10, %11, %cst_11 {dimension_numbers = #tpu.dot_dimension_numbers<[1], [0], [0], [1], [0, 0, 1, 1], [], []>} : vector<2x32xf32>, vector<32x4xf32>, vector<2x4xf32> -> vector<2x4xf32>
    %c0_12 = arith.constant 0 : index
    %c0_13 = arith.constant 0 : index
    %13 = vector.load %arg6[%c0_12, %c0_13] : memref<1x4xf32, #tpu.memory_space<vmem>>, vector<1x4xf32>
    %14 = vector.broadcast %13 : vector<1x4xf32> to vector<2x4xf32>
    %15 = arith.addf %12, %14 : vector<2x4xf32>
    %c0_14 = arith.constant 0 : index
    %c0_15 = arith.constant 0 : index
    %16 = vector.load %arg7[%c0_14, %c0_15] : memref<2x4xf32, #tpu.memory_space<vmem>>, vector<2x4xf32>
    tpu.vector_store %arg7[%c0_14, %c0_15], %15 {strides = array<i32>} : memref<2x4xf32, #tpu.memory_space<vmem>>, vector<2x4xf32>,
    return
  }
  func.func @transform_0(%arg0: i32) -> (i32, i32) {
    %c0_i32 = arith.constant 0 : i32
    %c0_i32_0 = arith.constant 0 : i32
    %c0_i32_1 = arith.constant 0 : i32
    return %c0_i32, %c0_i32_0 : i32, i32
  }
  func.func @transform_1(%arg0: i32) -> (i32, i32) {
    %c0_i32 = arith.constant 0 : i32
    %c0_i32_0 = arith.constant 0 : i32
    %c0_i32_1 = arith.constant 0 : i32
    return %c0_i32, %c0_i32_0 : i32, i32
  }
  func.func @transform_2(%arg0: i32) -> (i32, i32) {
    %c0_i32 = arith.constant 0 : i32
    %c0_i32_0 = arith.constant 0 : i32
    %c0_i32_1 = arith.constant 0 : i32
    return %c0_i32, %c0_i32_0 : i32, i32
  }
  func.func @transform_3(%arg0: i32) -> (i32, i32) {
    %c0_i32 = arith.constant 0 : i32
    %c0_i32_0 = arith.constant 0 : i32
    %c0_i32_1 = arith.constant 0 : i32
    return %c0_i32, %c0_i32_0 : i32, i32
  }
  func.func @transform_4(%arg0: i32) -> (i32, i32) {
    %c0_i32 = arith.constant 0 : i32
    %c0_i32_0 = arith.constant 0 : i32
    %c0_i32_1 = arith.constant 0 : i32
    return %c0_i32, %c0_i32_0 : i32, i32
  }
  func.func @transform_5(%arg0: i32) -> (i32, i32) {
    %c0_i32 = arith.constant 0 : i32
    %c0_i32_0 = arith.constant 0 : i32
    %c0_i32_1 = arith.constant 0 : i32
    return %c0_i32, %c0_i32_0 : i32, i32
  }
  func.func @transform_6(%arg0: i32) -> (i32, i32) {
    %c0_i32 = arith.constant 0 : i32
    %c0_i32_0 = arith.constant 0 : i32
    %c0_i32_1 = arith.constant 0 : i32
    return %c0_i32, %c0_i32_0 : i32, i32
  }
}

</mosaic_0001>

<llo_original>
// kernel: tpu_custom_call.1
$region0: #{tpu_custom_call.1}
  #allocation0 [shape = 'u32[]', space=smem, size = 0x4, offset = 0x4, fixed_abs, tag = 'smem constant byte address 0x4 - core index']
  #allocation1 [shape = 'u32[72,128]{1,0:T(1,128)}', space=vmem, size = 0x9000, scoped, tag = 'internal scratch']
  %s0 = inlined_call_operand.vmem [shape: f32[4,512], index: 0, kind: input, shape index: {}]
  %s1 = inlined_call_operand.vmem [shape: f32[32,4], index: 1, kind: input, shape index: {}]
  %s2 = inlined_call_operand.vmem [shape: f32[32,1], index: 2, kind: input, shape index: {}]
  %s3 = inlined_call_operand.vmem [shape: f32[512,2], index: 3, kind: input, shape index: {}]
  %s4 = inlined_call_operand.vmem [shape: f32[32,4], index: 4, kind: input, shape index: {}]
  %s5 = inlined_call_operand.vmem [shape: f32[1,4], index: 5, kind: input, shape index: {}]
  %s6 = inlined_call_operand.hbm [shape: f32[2,4], index: 6, kind: output, shape index: {}]
  %s7 = sld [smem:[#allocation0]]
  $region34: #{tpu_custom_call.1} parent=0
    _
  %s9 = ssub.s32 1, %s7
  %s10 = scalar_select 0, %s9, %s7
  $region1: #{tpu_custom_call.1} parent=0
    #allocation2 [shape = 'u8[1024]{0}', space=vmem, size = 0x400, scoped, tag = 'output window, operand 0, single buffered']
    #allocation3 [shape = 's32[1]{0}', space=sflag, size = 0x4, scoped, tag = 'scoped memory for tpu_custom_call.1']
    %11 = vsyncpa [#allocation3], 0
    // Predicated region
    $region2: #{tpu_custom_call.1} parent=1 // pred_check
      _
    $region3: #{tpu_custom_call.1} parent=1 // pred_check_branch
      %13 = sbr.rel (0) target = $region5
    $region4: #{tpu_custom_call.1} parent=1 // pred_region
      _
    $region5: #{tpu_custom_call.1} parent=1 // pred_fallthru
      _
    // Predicated region
    $region6: #{tpu_custom_call.1} parent=1 // pred_check
      _
    $region7: #{tpu_custom_call.1} parent=1 // pred_check_branch
      %15 = sbr.rel (0) target = $region9
    $region8: #{tpu_custom_call.1} parent=1 // pred_region
      _
    $region9: #{tpu_custom_call.1} parent=1 // pred_fallthru
      _
    // Predicated region
    $region10: #{tpu_custom_call.1} parent=1 // pred_check
      _
    $region11: #{tpu_custom_call.1} parent=1 // pred_check_branch
      %17 = sbr.rel (0) target = $region13
    $region12: #{tpu_custom_call.1} parent=1 // pred_region
      _
    $region13: #{tpu_custom_call.1} parent=1 // pred_fallthru
      _
    // Predicated region
    $region14: #{tpu_custom_call.1} parent=1 // pred_check
      _
    $region15: #{tpu_custom_call.1} parent=1 // pred_check_branch
      %19 = sbr.rel (0) target = $region17
    $region16: #{tpu_custom_call.1} parent=1 // pred_region
      _
    $region17: #{tpu_custom_call.1} parent=1 // pred_fallthru
      _
    // Predicated region
    $region18: #{tpu_custom_call.1} parent=1 // pred_check
      _
    $region19: #{tpu_custom_call.1} parent=1 // pred_check_branch
      %21 = sbr.rel (0) target = $region21
    $region20: #{tpu_custom_call.1} parent=1 // pred_region
      _
    $region21: #{tpu_custom_call.1} parent=1 // pred_fallthru
      _
    // Predicated region
    $region22: #{tpu_custom_call.1} parent=1 // pred_check
      _
    $region23: #{tpu_custom_call.1} parent=1 // pred_check_branch
      %23 = sbr.rel (0) target = $region25
    $region24: #{tpu_custom_call.1} parent=1 // pred_region
      _
    $region25: #{tpu_custom_call.1} parent=1 // pred_fallthru
      _
    %v24 = vld [vmem:[%s1] sm:$0xff]
    %v25 = vld [vmem:[%s1 + $0x8] sm:$0xff]
    %v26 = vld [vmem:[%s1 + $0x10] sm:$0xff]
    %v27 = vld [vmem:[%s1 + $0x18] sm:$0xff]
    %v28 = vld [vmem:[%s0] sm:$0xff]
    %v29 = vld [vmem:[%s0 + $0x8] sm:$0xff]
    %v30 = vld [vmem:[%s2] sm:$0xff]
    %v31 = vld [vmem:[%s2 + $0x8] sm:$0xff]
    %v32 = vld [vmem:[%s2 + $0x10] sm:$0xff]
    %v33 = vld [vmem:[%s2 + $0x18] sm:$0xff]
    %35 = vset.pattern.permute.xlu0 0
    %36 = vperm.xlu0 %35, %v30
    %v37 = vpop.permute.xlu0 %36
    %40 = vset.pattern.permute.xlu0 0
    %41 = vperm.xlu0 %40, %v31
    %v42 = vpop.permute.xlu0 %41
    %45 = vset.pattern.permute.xlu0 0
    %46 = vperm.xlu0 %45, %v32
    %v47 = vpop.permute.xlu0 %46
    %50 = vset.pattern.permute.xlu0 0
    %51 = vperm.xlu0 %50, %v33
    %v52 = vpop.permute.xlu0 %51
    %56 = vst [vmem:[#allocation1] ss:$2 sm:$0xff] %v28
    %s57 = scalar_lea.vmem [#allocation1], 16
    %58 = vst [vmem:[%s57] ss:$2 sm:$0xff] %v29
    %v59 = vld.sshfl [vmem:[#allocation1] sm:$0xff pattern:$0x75316420]
    %v60 = vld.sshfl [vmem:[#allocation1 + $0x8] sm:$0xff pattern:$0x75316420]
    %v61 = vld.sshfl [vmem:[#allocation1 + $0x10] sm:$0xff pattern:$0x75316420]
    %v62 = vld.sshfl [vmem:[#allocation1 + $0x18] sm:$0xff pattern:$0x75316420]
    %vm63 = vcmask 31744
    %v65 = vsel %vm63, %v24, 0
    %v68 = vsel %vm63, %v25, 0
    %v71 = vsel %vm63, %v26, 0
    %v74 = vsel %vm63, %v27, 0
    %vm76 = vcmask 1043456
    %v77 = vsel %vm76, %v59, 0
    %v79 = vsel %vm76, %v60, 0
    %v81 = vsel %vm76, %v61, 0
    %v83 = vsel %vm76, %v62, 0
    %85 = vmatpush.msra.mxu0 0.0
    %86 = vmatpush.msra.mxu0 0.0
    %87 = vmatpush.msra.mxu0 0.0
    %88 = vmatpush.msra.mxu0 0.0
    %89 = vmatpush.msra.mxu0 0.0
    %90 = vmatpush.msra.mxu0 0.0
    %91 = vmatpush.msra.mxu0 0.0
    %92 = vmatpush.msra.mxu0 0.0
    %93 = vmatpush.msra.mxu0 0.0
    %94 = vmatpush.msra.mxu0 0.0
    %95 = vmatpush.msra.mxu0 0.0
    %96 = vmatpush.msra.mxu0 0.0
    %97 = vmatpush.msra.mxu0 0.0
    %98 = vmatpush.msra.mxu0 0.0
    %99 = vmatpush.msra.mxu0 0.0
    %100 = vmatpush.msra.mxu0 %v77
    %101 = vmatmul.f32.gmra.mxu0 %v65
    %v102 = vpop.f32.mrf.mxu0
    %v103 = vadd.f32 %v37, %v102
    %104 = vmatmul.f32.gmra.mxu0 %v68
    %v105 = vpop.f32.mrf.mxu0
    %v106 = vadd.f32 %v42, %v105
    %107 = vmatmul.f32.gmra.mxu0 %v71
    %v108 = vpop.f32.mrf.mxu0
    %v109 = vadd.f32 %v47, %v108
    %110 = vmatmul.f32.gmra.mxu0 %v74
    %v111 = vpop.f32.mrf.mxu0
    %v112 = vadd.f32 %v52, %v111
    %113 = vdwg.mxu0
    %114 = vmatpush.msra.mxu0 0.0
    %115 = vmatpush.msra.mxu0 0.0
    %116 = vmatpush.msra.mxu0 0.0
    %117 = vmatpush.msra.mxu0 0.0
    %118 = vmatpush.msra.mxu0 0.0
    %119 = vmatpush.msra.mxu0 0.0
    %120 = vmatpush.msra.mxu0 0.0
    %121 = vmatpush.msra.mxu0 0.0
    %122 = vmatpush.msra.mxu0 0.0
    %123 = vmatpush.msra.mxu0 0.0
    %124 = vmatpush.msra.mxu0 0.0
    %125 = vmatpush.msra.mxu0 0.0
    %126 = vmatpush.msra.mxu0 0.0
    %127 = vmatpush.msra.mxu0 0.0
    %128 = vmatpush.msra.mxu0 0.0
    %129 = vmatpush.msra.mxu0 %v79
    %130 = vmatmul.f32.gmra.mxu0 %v65
    %v131 = vpop.f32.mrf.mxu0
    %v132 = vadd.f32 %v37, %v131
    %133 = vmatmul.f32.gmra.mxu0 %v68
    %v134 = vpop.f32.mrf.mxu0
    %v135 = vadd.f32 %v42, %v134
    %136 = vmatmul.f32.gmra.mxu0 %v71
    %v137 = vpop.f32.mrf.mxu0
    %v138 = vadd.f32 %v47, %v137
    %139 = vmatmul.f32.gmra.mxu0 %v74
    %v140 = vpop.f32.mrf.mxu0
    %v141 = vadd.f32 %v52, %v140
    %142 = vdwg.mxu0
    %143 = vmatpush.msra.mxu0 0.0
    %144 = vmatpush.msra.mxu0 0.0
    %145 = vmatpush.msra.mxu0 0.0
    %146 = vmatpush.msra.mxu0 0.0
    %147 = vmatpush.msra.mxu0 0.0
    %148 = vmatpush.msra.mxu0 0.0
    %149 = vmatpush.msra.mxu0 0.0
    %150 = vmatpush.msra.mxu0 0.0
    %151 = vmatpush.msra.mxu0 0.0
    %152 = vmatpush.msra.mxu0 0.0
    %153 = vmatpush.msra.mxu0 0.0
    %154 = vmatpush.msra.mxu0 0.0
    %155 = vmatpush.msra.mxu0 0.0
    %156 = vmatpush.msra.mxu0 0.0
    %157 = vmatpush.msra.mxu0 0.0
    %158 = vmatpush.msra.mxu0 %v81
    %159 = vmatmul.f32.gmra.mxu0 %v65
    %v160 = vpop.f32.mrf.mxu0
    %v161 = vadd.f32 %v37, %v160
    %162 = vmatmul.f32.gmra.mxu0 %v68
    %v163 = vpop.f32.mrf.mxu0
    %v164 = vadd.f32 %v42, %v163
    %165 = vmatmul.f32.gmra.mxu0 %v71
    %v166 = vpop.f32.mrf.mxu0
    %v167 = vadd.f32 %v47, %v166
    %168 = vmatmul.f32.gmra.mxu0 %v74
    %v169 = vpop.f32.mrf.mxu0
    %v170 = vadd.f32 %v52, %v169
    %171 = vdwg.mxu0
    %172 = vmatpush.msra.mxu0 0.0
    %173 = vmatpush.msra.mxu0 0.0
    %174 = vmatpush.msra.mxu0 0.0
    %175 = vmatpush.msra.mxu0 0.0
    %176 = vmatpush.msra.mxu0 0.0
    %177 = vmatpush.msra.mxu0 0.0
    %178 = vmatpush.msra.mxu0 0.0
    %179 = vmatpush.msra.mxu0 0.0
    %180 = vmatpush.msra.mxu0 0.0
    %181 = vmatpush.msra.mxu0 0.0
    %182 = vmatpush.msra.mxu0 0.0
    %183 = vmatpush.msra.mxu0 0.0
    %184 = vmatpush.msra.mxu0 0.0
    %185 = vmatpush.msra.mxu0 0.0
    %186 = vmatpush.msra.mxu0 0.0
    %187 = vmatpush.msra.mxu0 %v83
    %188 = vmatmul.f32.gmra.mxu0 %v65
    %v189 = vpop.f32.mrf.mxu0
    %v190 = vadd.f32 %v37, %v189
    %191 = vmatmul.f32.gmra.mxu0 %v68
    %v192 = vpop.f32.mrf.mxu0
    %v193 = vadd.f32 %v42, %v192
    %194 = vmatmul.f32.gmra.mxu0 %v71
    %v195 = vpop.f32.mrf.mxu0
    %v196 = vadd.f32 %v47, %v195
    %197 = vmatmul.f32.gmra.mxu0 %v74
    %v198 = vpop.f32.mrf.mxu0
    %v199 = vadd.f32 %v52, %v198
    %200 = vdwg.mxu0
    %v201 = vmax.f32 %v103, 0.0
    %v202 = vmax.f32 %v132, 0.0
    %v203 = vmax.f32 %v161, 0.0
    %v204 = vmax.f32 %v190, 0.0
    %v205 = vmax.f32 %v106, 0.0
    %v206 = vmax.f32 %v135, 0.0
    %v207 = vmax.f32 %v164, 0.0
    %v208 = vmax.f32 %v193, 0.0
    %v209 = vmax.f32 %v109, 0.0
    %v210 = vmax.f32 %v138, 0.0
    %v211 = vmax.f32 %v167, 0.0
    %v212 = vmax.f32 %v196, 0.0
    %v213 = vmax.f32 %v112, 0.0
    %v214 = vmax.f32 %v141, 0.0
    %v215 = vmax.f32 %v170, 0.0
    %v216 = vmax.f32 %v199, 0.0
    %v217 = vld [vmem:[%s3] sm:$0xff]
    %v218 = vld [vmem:[%s3 + $0x8] sm:$0xff]
    %v219 = vld [vmem:[%s3 + $0x10] sm:$0xff]
    %v220 = vld [vmem:[%s3 + $0x18] sm:$0xff]
    %v221 = vld [vmem:[%s3 + $0x20] sm:$0xff]
    %v222 = vld [vmem:[%s3 + $0x28] sm:$0xff]
    %v223 = vld [vmem:[%s3 + $0x30] sm:$0xff]
    %v224 = vld [vmem:[%s3 + $0x38] sm:$0xff]
    %v225 = vld [vmem:[%s3 + $0x40] sm:$0xff]
    %v226 = vld [vmem:[%s3 + $0x48] sm:$0xff]
    %v227 = vld [vmem:[%s3 + $0x50] sm:$0xff]
    %v228 = vld [vmem:[%s3 + $0x58] sm:$0xff]
    %v229 = vld [vmem:[%s3 + $0x60] sm:$0xff]
    %v230 = vld [vmem:[%s3 + $0x68] sm:$0xff]
    %v231 = vld [vmem:[%s3 + $0x70] sm:$0xff]
    %v232 = vld [vmem:[%s3 + $0x78] sm:$0xff]
    %v233 = vld [vmem:[%s3 + $0x80] sm:$0xff]
    %v234 = vld [vmem:[%s3 + $0x88] sm:$0xff]
    %v235 = vld [vmem:[%s3 + $0x90] sm:$0xff]
    %v236 = vld [vmem:[%s3 + $0x98] sm:$0xff]
    %v237 = vld [vmem:[%s3 + $0xa0] sm:$0xff]
    %v238 = vld [vmem:[%s3 + $0xa8] sm:$0xff]
    %v239 = vld [vmem:[%s3 + $0xb0] sm:$0xff]
    %v240 = vld [vmem:[%s3 + $0xb8] sm:$0xff]
    %v241 = vld [vmem:[%s3 + $0xc0] sm:$0xff]
    %v242 = vld [vmem:[%s3 + $0xc8] sm:$0xff]
    %v243 = vld [vmem:[%s3 + $0xd0] sm:$0xff]
    %v244 = vld [vmem:[%s3 + $0xd8] sm:$0xff]
    %v245 = vld [vmem:[%s3 + $0xe0] sm:$0xff]
    %v246 = vld [vmem:[%s3 + $0xe8] sm:$0xff]
    %v247 = vld [vmem:[%s3 + $0xf0] sm:$0xff]
    %v248 = vld [vmem:[%s3 + $0xf8] sm:$0xff]
    %v249 = vld [vmem:[%s3 + $0x100] sm:$0xff]
    %v250 = vld [vmem:[%s3 + $0x108] sm:$0xff]
    %v251 = vld [vmem:[%s3 + $0x110] sm:$0xff]
    %v252 = vld [vmem:[%s3 + $0x118] sm:$0xff]
    %v253 = vld [vmem:[%s3 + $0x120] sm:$0xff]
    %v254 = vld [vmem:[%s3 + $0x128] sm:$0xff]
    %v255 = vld [vmem:[%s3 + $0x130] sm:$0xff]
    %v256 = vld [vmem:[%s3 + $0x138] sm:$0xff]
    %v257 = vld [vmem:[%s3 + $0x140] sm:$0xff]
    %v258 = vld [vmem:[%s3 + $0x148] sm:$0xff]
    %v259 = vld [vmem:[%s3 + $0x150] sm:$0xff]
    %v260 = vld [vmem:[%s3 + $0x158] sm:$0xff]
    %v261 = vld [vmem:[%s3 + $0x160] sm:$0xff]
    %v262 = vld [vmem:[%s3 + $0x168] sm:$0xff]
    %v263 = vld [vmem:[%s3 + $0x170] sm:$0xff]
    %v264 = vld [vmem:[%s3 + $0x178] sm:$0xff]
    %v265 = vld [vmem:[%s3 + $0x180] sm:$0xff]
    %v266 = vld [vmem:[%s3 + $0x188] sm:$0xff]
    %v267 = vld [vmem:[%s3 + $0x190] sm:$0xff]
    %v268 = vld [vmem:[%s3 + $0x198] sm:$0xff]
    %v269 = vld [vmem:[%s3 + $0x1a0] sm:$0xff]
    %v270 = vld [vmem:[%s3 + $0x1a8] sm:$0xff]
    %v271 = vld [vmem:[%s3 + $0x1b0] sm:$0xff]
    %v272 = vld [vmem:[%s3 + $0x1b8] sm:$0xff]
    %v273 = vld [vmem:[%s3 + $0x1c0] sm:$0xff]
    %v274 = vld [vmem:[%s3 + $0x1c8] sm:$0xff]
    %v275 = vld [vmem:[%s3 + $0x1d0] sm:$0xff]
    %v276 = vld [vmem:[%s3 + $0x1d8] sm:$0xff]
    %v277 = vld [vmem:[%s3 + $0x1e0] sm:$0xff]
    %v278 = vld [vmem:[%s3 + $0x1e8] sm:$0xff]
    %v279 = vld [vmem:[%s3 + $0x1f0] sm:$0xff]
    %v280 = vld [vmem:[%s3 + $0x1f8] sm:$0xff]
    %281 = vmatpush.msra.mxu0 %v232
    %282 = vmatpush.msra.mxu0 %v231
    %283 = vmatpush.msra.mxu0 %v230
    %284 = vmatpush.msra.mxu0 %v229
    %285 = vmatpush.msra.mxu0 %v228
    %286 = vmatpush.msra.mxu0 %v227
    %287 = vmatpush.msra.mxu0 %v226
    %288 = vmatpush.msra.mxu0 %v225
    %289 = vmatpush.msra.mxu0 %v224
    %290 = vmatpush.msra.mxu0 %v223
    %291 = vmatpush.msra.mxu0 %v222
    %292 = vmatpush.msra.mxu0 %v221
    %293 = vmatpush.msra.mxu0 %v220
    %294 = vmatpush.msra.mxu0 %v219
    %295 = vmatpush.msra.mxu0 %v218
    %296 = vmatpush.msra.mxu0 %v217
    %297 = vmatmul.f32.gmra.mxu0 %v201
    %v298 = vpop.f32.mrf.mxu0
    %v299 = vadd.f32 0.0, %v298
    %300 = vmatmul.f32.gmra.mxu0 %v205
    %v301 = vpop.f32.mrf.mxu0
    %v302 = vadd.f32 0.0, %v301
    %303 = vmatmul.f32.gmra.mxu0 %v209
    %v304 = vpop.f32.mrf.mxu0
    %v305 = vadd.f32 0.0, %v304
    %306 = vmatmul.f32.gmra.mxu0 %v213
    %v307 = vpop.f32.mrf.mxu0
    %v308 = vadd.f32 0.0, %v307
    %309 = vdwg.mxu0
    %310 = vmatpush.msra.mxu0 %v248
    %311 = vmatpush.msra.mxu0 %v247
    %312 = vmatpush.msra.mxu0 %v246
    %313 = vmatpush.msra.mxu0 %v245
    %314 = vmatpush.msra.mxu0 %v244
    %315 = vmatpush.msra.mxu0 %v243
    %316 = vmatpush.msra.mxu0 %v242
    %317 = vmatpush.msra.mxu0 %v241
    %318 = vmatpush.msra.mxu0 %v240
    %319 = vmatpush.msra.mxu0 %v239
    %320 = vmatpush.msra.mxu0 %v238
    %321 = vmatpush.msra.mxu0 %v237
    %322 = vmatpush.msra.mxu0 %v236
    %323 = vmatpush.msra.mxu0 %v235
    %324 = vmatpush.msra.mxu0 %v234
    %325 = vmatpush.msra.mxu0 %v233
    %326 = vmatmul.f32.gmra.mxu0 %v202
    %v327 = vpop.f32.mrf.mxu0
    %v328 = vadd.f32 %v299, %v327
    %329 = vmatmul.f32.gmra.mxu0 %v206
    %v330 = vpop.f32.mrf.mxu0
    %v331 = vadd.f32 %v302, %v330
    %332 = vmatmul.f32.gmra.mxu0 %v210
    %v333 = vpop.f32.mrf.mxu0
    %v334 = vadd.f32 %v305, %v333
    %335 = vmatmul.f32.gmra.mxu0 %v214
    %v336 = vpop.f32.mrf.mxu0
    %v337 = vadd.f32 %v308, %v336
    %338 = vdwg.mxu0
    %339 = vmatpush.msra.mxu0 %v264
    %340 = vmatpush.msra.mxu0 %v263
    %341 = vmatpush.msra.mxu0 %v262
    %342 = vmatpush.msra.mxu0 %v261
    %343 = vmatpush.msra.mxu0 %v260
    %344 = vmatpush.msra.mxu0 %v259
    %345 = vmatpush.msra.mxu0 %v258
    %346 = vmatpush.msra.mxu0 %v257
    %347 = vmatpush.msra.mxu0 %v256
    %348 = vmatpush.msra.mxu0 %v255
    %349 = vmatpush.msra.mxu0 %v254
    %350 = vmatpush.msra.mxu0 %v253
    %351 = vmatpush.msra.mxu0 %v252
    %352 = vmatpush.msra.mxu0 %v251
    %353 = vmatpush.msra.mxu0 %v250
    %354 = vmatpush.msra.mxu0 %v249
    %355 = vmatmul.f32.gmra.mxu0 %v203
    %v356 = vpop.f32.mrf.mxu0
    %v357 = vadd.f32 %v328, %v356
    %358 = vmatmul.f32.gmra.mxu0 %v207
    %v359 = vpop.f32.mrf.mxu0
    %v360 = vadd.f32 %v331, %v359
    %361 = vmatmul.f32.gmra.mxu0 %v211
    %v362 = vpop.f32.mrf.mxu0
    %v363 = vadd.f32 %v334, %v362
    %364 = vmatmul.f32.gmra.mxu0 %v215
    %v365 = vpop.f32.mrf.mxu0
    %v366 = vadd.f32 %v337, %v365
    %367 = vdwg.mxu0
    %368 = vmatpush.msra.mxu0 %v280
    %369 = vmatpush.msra.mxu0 %v279
    %370 = vmatpush.msra.mxu0 %v278
    %371 = vmatpush.msra.mxu0 %v277
    %372 = vmatpush.msra.mxu0 %v276
    %373 = vmatpush.msra.mxu0 %v275
    %374 = vmatpush.msra.mxu0 %v274
    %375 = vmatpush.msra.mxu0 %v273
    %376 = vmatpush.msra.mxu0 %v272
    %377 = vmatpush.msra.mxu0 %v271
    %378 = vmatpush.msra.mxu0 %v270
    %379 = vmatpush.msra.mxu0 %v269
    %380 = vmatpush.msra.mxu0 %v268
    %381 = vmatpush.msra.mxu0 %v267
    %382 = vmatpush.msra.mxu0 %v266
    %383 = vmatpush.msra.mxu0 %v265
    %384 = vmatmul.f32.gmra.mxu0 %v204
    %v385 = vpop.f32.mrf.mxu0
    %v386 = vadd.f32 %v357, %v385
    %387 = vmatmul.f32.gmra.mxu0 %v208
    %v388 = vpop.f32.mrf.mxu0
    %v389 = vadd.f32 %v360, %v388
    %390 = vmatmul.f32.gmra.mxu0 %v212
    %v391 = vpop.f32.mrf.mxu0
    %v392 = vadd.f32 %v363, %v391
    %393 = vmatmul.f32.gmra.mxu0 %v216
    %v394 = vpop.f32.mrf.mxu0
    %v395 = vadd.f32 %v366, %v394
    %396 = vdwg.mxu0
    %397 = vxpose.xlu0.b32.start [1/16] %v386, 128
    %398 = vxpose.xlu0.b32.cont [2/16] %v389, 128
    %399 = vxpose.xlu0.b32.cont [3/16] %v392, 128
    %400 = vxpose.xlu0.b32.cont [4/16] %v395, 128
    %401 = vxpose.xlu0.b32.cont [5/16] 0.0, 128
    %402 = vxpose.xlu0.b32.cont [6/16] 0.0, 128
    %403 = vxpose.xlu0.b32.cont [7/16] 0.0, 128
    %404 = vxpose.xlu0.b32.cont [8/16] 0.0, 128
    %405 = vxpose.xlu0.b32.cont [9/16] 0.0, 128
    %406 = vxpose.xlu0.b32.cont [10/16] 0.0, 128
    %407 = vxpose.xlu0.b32.cont [11/16] 0.0, 128
    %408 = vxpose.xlu0.b32.cont [12/16] 0.0, 128
    %409 = vxpose.xlu0.b32.cont [13/16] 0.0, 128
    %410 = vxpose.xlu0.b32.cont [14/16] 0.0, 128
    %411 = vxpose.xlu0.b32.cont [15/16] 0.0, 128
    %412 = vxpose.xlu0.b32.end [16/16] 0.0, 128
    %v413 = vpop.trf.xlu0
    %v414 = vpop.trf.xlu0
    %v415 = vpop.trf.xlu0
    %v416 = vpop.trf.xlu0
    %v417 = vpop.trf.xlu0
    %v418 = vpop.trf.xlu0
    %v419 = vpop.trf.xlu0
    %v420 = vpop.trf.xlu0
    %v421 = vpop.trf.xlu0
    %v422 = vpop.trf.xlu0
    %v423 = vpop.trf.xlu0
    %v424 = vpop.trf.xlu0
    %v425 = vpop.trf.xlu0
    %v426 = vpop.trf.xlu0
    %v427 = vpop.trf.xlu0
    %v428 = vpop.trf.xlu0
    %v429 = vld [vmem:[%s4] sm:$0xff]
    %v430 = vld [vmem:[%s4 + $0x8] sm:$0xff]
    %v431 = vld [vmem:[%s4 + $0x10] sm:$0xff]
    %v432 = vld [vmem:[%s4 + $0x18] sm:$0xff]
    %v433 = vld [vmem:[%s5] sm:$0x1]
    %v435 = vperm.slane %v433, 0
    %vm437 = vcmask 261120
    %v439 = vsel %vm437, %v413, 0
    %441 = vmatpush.msra.mxu0 0.0
    %442 = vmatpush.msra.mxu0 0.0
    %443 = vmatpush.msra.mxu0 0.0
    %444 = vmatpush.msra.mxu0 0.0
    %445 = vmatpush.msra.mxu0 0.0
    %446 = vmatpush.msra.mxu0 0.0
    %447 = vmatpush.msra.mxu0 0.0
    %448 = vmatpush.msra.mxu0 0.0
    %449 = vmatpush.msra.mxu0 0.0
    %450 = vmatpush.msra.mxu0 0.0
    %451 = vmatpush.msra.mxu0 0.0
    %452 = vmatpush.msra.mxu0 0.0
    %453 = vmatpush.msra.mxu0 %v432
    %454 = vmatpush.msra.mxu0 %v431
    %455 = vmatpush.msra.mxu0 %v430
    %456 = vmatpush.msra.mxu0 %v429
    %457 = vmatmul.f32.gmra.mxu0 %v439
    %v458 = vpop.f32.mrf.mxu0
    %v459 = vadd.f32 %v435, %v458
    %460 = vdwg.mxu0
    %vm461 = vcmask 25600
    %462 = vst.msk [vmem:[#allocation2] sm:$0x3] %vm461, %v459
    // Predicated region
    $region26: #{tpu_custom_call.1} parent=1 // pred_check
      _
    $region27: #{tpu_custom_call.1} parent=1 // pred_check_branch
      %464 = sbr.rel (0) target = $region29
    $region28: #{tpu_custom_call.1} parent=1 // pred_region
      %466 = vsyncadd [#allocation3], 0
      %s468 = sshll.u32 [#allocation2], 4
      %s469 = int_to_ptr.vmem [resolvable:$true] %s468
      %s470 = sshll.u32 %s6, 4
      %s471 = int_to_ptr.hbm [resolvable:$true] %s470
      %473 = dma.vmem_to_hbm [thread:$0]  %s469, 32, %s471, [#allocation3]
    $region29: #{tpu_custom_call.1} parent=1 // pred_fallthru
      _
    // Predicated region
    $region30: #{tpu_custom_call.1} parent=1 // pred_check
      _
    $region31: #{tpu_custom_call.1} parent=1 // pred_check_branch
      %475 = sbr.rel (0) target = $region33
    $region32: #{tpu_custom_call.1} parent=1 // pred_region
      %477 = dma.done [#allocation3], 32
    $region33: #{tpu_custom_call.1} parent=1 // pred_fallthru
      _
    %478 = vsyncpa [#allocation3], 1

</llo_original>
